<compile_context>
chip_gen: v6e
topology: v6e:2x2x1
jax: 0.10.0
libtpu: 0.0.40
codegen_flags: <defaults>
</compile_context>

<pallas_src>
import functools
import math

import jax
import jax.numpy as jnp
from jax.experimental import pallas as pl
from jax.experimental.pallas import tpu as pltpu

# --- small, module-consistent hyperparameters ------------------------------
B = 2            # batch
S = 8            # seq_len
INPUT_DIM = 128  # input_dim  (lane-aligned small stand-in)
HIDDEN = 128     # hidden_dim (lane-aligned small stand-in)
THRESHOLD = 0.5


# ---------------------------------------------------------------------------
# fused kernel (feature-major / transposed orientation):
#   x_t: (D, N)   w1: (H, D)   b1: (H, 1)   w2: (H, 1)   b2: (1, 1) in SMEM
#   outputs: mask, probs each (1, N)  with N = B*S   (lane-dense stores)
# ---------------------------------------------------------------------------
def _binary_patch_kernel(x_t_ref, w1_ref, b1_ref, w2_ref, b2_ref,
                         mask_ref, probs_ref, *, logit_threshold):
    # first linear: (H, D) @ (D, N) -> (H, N) on the MXU, f32 accumulation
    h = jnp.dot(w1_ref[...], x_t_ref[...], preferred_element_type=jnp.float32)
    h = jnp.maximum(h + b1_ref[...], 0.0)                       # relu, (H, N)

    # second linear (out_features = 1): VPU multiply + XLU sublane reduce
    # instead of a 1-lane MXU matmul.
    logits = jnp.sum(h * w2_ref[...], axis=0, keepdims=True)    # (1, N)
    logits = logits + b2_ref[0, 0]                               # SMEM scalar add

    # mask from logits vs. static logit(threshold): no EUP dependency,
    # identical to (sigmoid(logits) > threshold).
    mask_ref[...] = (logits > logit_threshold).astype(jnp.float32)

    # exact sigmoid with a single transcendental: 0.5 * (tanh(z/2) + 1)
    probs_ref[...] = 0.5 * (jnp.tanh(0.5 * logits) + 1.0)


# ---------------------------------------------------------------------------
# pallas_call wrapper
# ---------------------------------------------------------------------------
@functools.partial(jax.jit, static_argnames=("threshold",))
def binary_patching_forward(latent_states, w1, b1, w2, b2, *, threshold=THRESHOLD):
    """latent_states: (B, S, D) f32; w1: (H, D); b1: (H,); w2: (1, H); b2: (1, 1).

    Returns (binary_mask, probs), each (B, S, 1) f32 — matching the torch module.
    """
    bsz, seq, in_dim = latent_states.shape
    hidden = w1.shape[0]
    n = bsz * seq

    # layout plumbing (outside the kernel): fold batch into rows and go
    # feature-major so the kernel's outputs are lane-dense.
    x_t = latent_states.reshape(n, in_dim).T      # (D, N)
    b1_col = b1.reshape(hidden, 1)                # (H, 1)
    w2_col = w2.reshape(hidden, 1)                # (H, 1)
    b2_s = b2.reshape(1, 1)                       # SMEM scalar

    # static logit-space threshold (0.0 for threshold = 0.5)
    logit_thr = float(math.log(threshold / (1.0 - threshold)))
    kernel = functools.partial(_binary_patch_kernel, logit_threshold=logit_thr)

    vmem = pl.BlockSpec(memory_space=pltpu.MemorySpace.VMEM)
    smem = pl.BlockSpec(memory_space=pltpu.MemorySpace.SMEM)

    mask_row, probs_row = pl.pallas_call(
        kernel,
        out_shape=(jax.ShapeDtypeStruct((1, n), jnp.float32),
                   jax.ShapeDtypeStruct((1, n), jnp.float32)),
        in_specs=[vmem, vmem, vmem, vmem, smem],
        out_specs=(vmem, vmem),
    )(x_t, w1, b1_col, w2_col, b2_s)

    mask = mask_row.reshape(bsz, seq, 1)
    probs = probs_row.reshape(bsz, seq, 1)
    return mask, probs


# ---------------------------------------------------------------------------
if __name__ == "__main__":
    root = jax.random.PRNGKey(0)
    k_x, k_w1, k_b1, k_w2, k_b2 = jax.random.split(root, 5)

    latent_states = jax.random.normal(k_x, (B, S, INPUT_DIM), jnp.float32)
    # weights in native torch nn.Linear layout: (out_features, in_features)
    w1 = jax.random.normal(k_w1, (HIDDEN, INPUT_DIM), jnp.float32) * 0.05
    b1 = jax.random.normal(k_b1, (HIDDEN,), jnp.float32) * 0.05
    w2 = jax.random.normal(k_w2, (1, HIDDEN), jnp.float32) * 0.05
    b2 = jax.random.normal(k_b2, (1, 1), jnp.float32) * 0.05

    mask, probs = binary_patching_forward(latent_states, w1, b1, w2, b2,
                                          threshold=THRESHOLD)
    mask, probs = jax.block_until_ready((mask, probs))

    # shape / sanity checks
    assert mask.shape == (B, S, 1), mask.shape
    assert probs.shape == (B, S, 1), probs.shape
    assert bool(jnp.all(jnp.isfinite(probs)))
    assert bool(jnp.all((probs >= 0.0) & (probs <= 1.0)))
    assert bool(jnp.all((mask == 0.0) | (mask == 1.0)))

    # pure-JAX reference (matches the torch module forward)
    ref_h = jnp.maximum(jnp.einsum('bsd,hd->bsh', latent_states, w1) + b1, 0.0)
    ref_logits = jnp.einsum('bsh,oh->bso', ref_h, w2) + b2
    ref_probs = jax.nn.sigmoid(ref_logits)
    ref_mask = (ref_probs > THRESHOLD).astype(jnp.float32)

    max_err = float(jnp.max(jnp.abs(probs - ref_probs)))
    assert bool(jnp.allclose(probs, ref_probs, atol=1e-5)), max_err
    assert bool(jnp.array_equal(mask, ref_mask))

    print("KERNEL_OK")
</pallas_src>

<mosaic_0001>
module attributes {stable_mosaic.version = 11 : i64} {
  func.func @_binary_patch_kernel(%arg0: memref<128x16xf32, #tpu.memory_space<vmem>>, %arg1: memref<128x128xf32, #tpu.memory_space<vmem>>, %arg2: memref<128x1xf32, #tpu.memory_space<vmem>>, %arg3: memref<128x1xf32, #tpu.memory_space<vmem>>, %arg4: memref<1x1xf32, #tpu.memory_space<smem>>, %arg5: memref<1x16xf32, #tpu.memory_space<vmem>>, %arg6: memref<1x16xf32, #tpu.memory_space<vmem>>) attributes {dimension_semantics = [], scalar_prefetch = 0 : i64, scratch_operands = 0 : i64, tpu.core_type = #tpu.core_type<tc>} {
    %c0 = arith.constant 0 : index
    %c0_0 = arith.constant 0 : index
    %0 = vector.load %arg1[%c0, %c0_0] : memref<128x128xf32, #tpu.memory_space<vmem>>, vector<128x128xf32>
    %c0_1 = arith.constant 0 : index
    %c0_2 = arith.constant 0 : index
    %1 = vector.load %arg0[%c0_1, %c0_2] : memref<128x16xf32, #tpu.memory_space<vmem>>, vector<128x16xf32>
    %cst = arith.constant dense<0.000000e+00> : vector<128x16xf32>
    %2 = tpu.matmul %0, %1, %cst {dimension_numbers = #tpu.dot_dimension_numbers<[1], [0], [0], [1], [0, 0, 1, 1], [], []>} : vector<128x128xf32>, vector<128x16xf32>, vector<128x16xf32> -> vector<128x16xf32>
    %c0_3 = arith.constant 0 : index
    %c0_4 = arith.constant 0 : index
    %3 = vector.load %arg2[%c0_3, %c0_4] : memref<128x1xf32, #tpu.memory_space<vmem>>, vector<128x1xf32>
    %4 = vector.broadcast %3 : vector<128x1xf32> to vector<128x16xf32>
    %5 = arith.addf %2, %4 : vector<128x16xf32>
    %cst_5 = arith.constant 0.000000e+00 : f32
    %6 = vector.broadcast %cst_5 : f32 to vector<128x16xf32>
    %7 = arith.maximumf %5, %6 : vector<128x16xf32>
    %c0_6 = arith.constant 0 : index
    %c0_7 = arith.constant 0 : index
    %8 = vector.load %arg3[%c0_6, %c0_7] : memref<128x1xf32, #tpu.memory_space<vmem>>, vector<128x1xf32>
    %9 = vector.broadcast %8 : vector<128x1xf32> to vector<128x16xf32>
    %10 = arith.mulf %7, %9 : vector<128x16xf32>
    %cst_8 = arith.constant dense<0.000000e+00> : vector<16xf32>
    %11 = vector.multi_reduction <add>, %10, %cst_8 [0] : vector<128x16xf32> to vector<16xf32>
    %12 = vector.shape_cast %11 : vector<16xf32> to vector<1x16xf32>
    %c0_9 = arith.constant 0 : index
    %c0_10 = arith.constant 0 : index
    %13 = memref.load %arg4[%c0_9, %c0_10] : memref<1x1xf32, #tpu.memory_space<smem>>
    %14 = vector.broadcast %13 : f32 to vector<1x16xf32>
    %15 = arith.addf %12, %14 : vector<1x16xf32>
    %cst_11 = arith.constant 0.000000e+00 : f32
    %16 = vector.broadcast %cst_11 : f32 to vector<1x16xf32>
    %17 = arith.cmpf ogt, %15, %16 : vector<1x16xf32>
    %18 = arith.extui %17 : vector<1x16xi1> to vector<1x16xi32>
    %19 = arith.sitofp %18 : vector<1x16xi32> to vector<1x16xf32>
    %c0_12 = arith.constant 0 : index
    %c0_13 = arith.constant 0 : index
    %20 = vector.load %arg5[%c0_12, %c0_13] : memref<1x16xf32, #tpu.memory_space<vmem>>, vector<1x16xf32>
    tpu.vector_store %arg5[%c0_12, %c0_13], %19 {strides = array<i32>} : memref<1x16xf32, #tpu.memory_space<vmem>>, vector<1x16xf32>,
    %cst_14 = arith.constant 5.000000e-01 : f32
    %21 = vector.broadcast %cst_14 : f32 to vector<1x16xf32>
    %22 = arith.mulf %21, %15 : vector<1x16xf32>
    %23 = math.tanh %22 : vector<1x16xf32>
    %cst_15 = arith.constant 1.000000e+00 : f32
    %24 = vector.broadcast %cst_15 : f32 to vector<1x16xf32>
    %25 = arith.addf %23, %24 : vector<1x16xf32>
    %cst_16 = arith.constant 5.000000e-01 : f32
    %26 = vector.broadcast %cst_16 : f32 to vector<1x16xf32>
    %27 = arith.mulf %26, %25 : vector<1x16xf32>
    %c0_17 = arith.constant 0 : index
    %c0_18 = arith.constant 0 : index
    %28 = vector.load %arg6[%c0_17, %c0_18] : memref<1x16xf32, #tpu.memory_space<vmem>>, vector<1x16xf32>
    tpu.vector_store %arg6[%c0_17, %c0_18], %27 {strides = array<i32>} : memref<1x16xf32, #tpu.memory_space<vmem>>, vector<1x16xf32>,
    return
  }
}

</mosaic_0001>

<llo_original>
// kernel: binary_patching_forward.1
$region0: #{binary_patching_forward.1}
  #allocation0 [shape = 'u32[]', space=smem, size = 0x4, offset = 0x4, fixed_abs, tag = 'smem constant byte address 0x4 - core index']
  #allocation1 [shape = 'u32[144,128]{1,0:T(1,128)}', space=vmem, size = 0x12000, scoped, tag = 'internal scratch']
  #allocation2 [shape = 'f32[1,1]{1,0:T(1,128)S(6)}', space=smem, size = 0x200, scoped, tag = 'scoped memory for binary_patching_forward.1']
  %s0 = inlined_call_operand.vmem [shape: f32[128,16], index: 0, kind: input, shape index: {}]
  %s1 = inlined_call_operand.vmem [shape: f32[128,128], index: 1, kind: input, shape index: {}]
  %s2 = inlined_call_operand.vmem [shape: f32[128,1], index: 2, kind: input, shape index: {}]
  %s3 = inlined_call_operand.vmem [shape: f32[128,1], index: 3, kind: input, shape index: {}]
  %s4 = inlined_call_operand.<no memory space> [shape: f32[1,1], index: 4, kind: input, shape index: {}]
  %s5 = inlined_call_operand.vmem [shape: f32[1,16], index: 5, kind: output, shape index: {0}]
  %s6 = inlined_call_operand.vmem [shape: f32[1,16], index: 6, kind: output, shape index: {1}]
  %7 = xla_tuple %s5, %s6
  %s8 = sld [smem:[#allocation0]]
  $region38: #{binary_patching_forward.1} parent=0
    _
  %s10 = ssub.s32 1, %s8
  %s11 = scalar_select 0, %s10, %s8
  %12 = sst [smem:[#allocation2]] %s4
  // Predicated region
  $region2: #{binary_patching_forward.1} parent=0 // pred_check
    _
  $region3: #{binary_patching_forward.1} parent=0 // pred_check_branch
    %14 = sbr.rel (0) target = $region5
  $region4: #{binary_patching_forward.1} parent=0 // pred_region
    _
  $region5: #{binary_patching_forward.1} parent=0 // pred_fallthru
    _
  // Predicated region
  $region6: #{binary_patching_forward.1} parent=0 // pred_check
    _
  $region7: #{binary_patching_forward.1} parent=0 // pred_check_branch
    %16 = sbr.rel (0) target = $region9
  $region8: #{binary_patching_forward.1} parent=0 // pred_region
    _
  $region9: #{binary_patching_forward.1} parent=0 // pred_fallthru
    _
  // Predicated region
  $region10: #{binary_patching_forward.1} parent=0 // pred_check
    _
  $region11: #{binary_patching_forward.1} parent=0 // pred_check_branch
    %18 = sbr.rel (0) target = $region13
  $region12: #{binary_patching_forward.1} parent=0 // pred_region
    _
  $region13: #{binary_patching_forward.1} parent=0 // pred_fallthru
    _
  // Predicated region
  $region14: #{binary_patching_forward.1} parent=0 // pred_check
    _
  $region15: #{binary_patching_forward.1} parent=0 // pred_check_branch
    %20 = sbr.rel (0) target = $region17
  $region16: #{binary_patching_forward.1} parent=0 // pred_region
    _
  $region17: #{binary_patching_forward.1} parent=0 // pred_fallthru
    _
  // Predicated region
  $region18: #{binary_patching_forward.1} parent=0 // pred_check
    _
  $region19: #{binary_patching_forward.1} parent=0 // pred_check_branch
    %22 = sbr.rel (0) target = $region21
  $region20: #{binary_patching_forward.1} parent=0 // pred_region
    _
  $region21: #{binary_patching_forward.1} parent=0 // pred_fallthru
    _
  %v23 = vld [vmem:[%s1] sm:$0xff]
  %v24 = vld [vmem:[%s1 + $0x8] sm:$0xff]
  %v25 = vld [vmem:[%s1 + $0x10] sm:$0xff]
  %v26 = vld [vmem:[%s1 + $0x18] sm:$0xff]
  %v27 = vld [vmem:[%s1 + $0x20] sm:$0xff]
  %v28 = vld [vmem:[%s1 + $0x28] sm:$0xff]
  %v29 = vld [vmem:[%s1 + $0x30] sm:$0xff]
  %v30 = vld [vmem:[%s1 + $0x38] sm:$0xff]
  %v31 = vld [vmem:[%s1 + $0x40] sm:$0xff]
  %v32 = vld [vmem:[%s1 + $0x48] sm:$0xff]
  %v33 = vld [vmem:[%s1 + $0x50] sm:$0xff]
  %v34 = vld [vmem:[%s1 + $0x58] sm:$0xff]
  %v35 = vld [vmem:[%s1 + $0x60] sm:$0xff]
  %v36 = vld [vmem:[%s1 + $0x68] sm:$0xff]
  %v37 = vld [vmem:[%s1 + $0x70] sm:$0xff]
  %v38 = vld [vmem:[%s1 + $0x78] sm:$0xff]
  %v39 = vld [vmem:[%s0] sm:$0xff]
  %v40 = vld [vmem:[%s0 + $0x8] sm:$0xff]
  %v41 = vld [vmem:[%s0 + $0x10] sm:$0xff]
  %v42 = vld [vmem:[%s0 + $0x18] sm:$0xff]
  %v43 = vld [vmem:[%s0 + $0x20] sm:$0xff]
  %v44 = vld [vmem:[%s0 + $0x28] sm:$0xff]
  %v45 = vld [vmem:[%s0 + $0x30] sm:$0xff]
  %v46 = vld [vmem:[%s0 + $0x38] sm:$0xff]
  %v47 = vld [vmem:[%s0 + $0x40] sm:$0xff]
  %v48 = vld [vmem:[%s0 + $0x48] sm:$0xff]
  %v49 = vld [vmem:[%s0 + $0x50] sm:$0xff]
  %v50 = vld [vmem:[%s0 + $0x58] sm:$0xff]
  %v51 = vld [vmem:[%s0 + $0x60] sm:$0xff]
  %v52 = vld [vmem:[%s0 + $0x68] sm:$0xff]
  %v53 = vld [vmem:[%s0 + $0x70] sm:$0xff]
  %v54 = vld [vmem:[%s0 + $0x78] sm:$0xff]
  %v55 = vld [vmem:[%s2] sm:$0xff]
  %v56 = vld [vmem:[%s2 + $0x8] sm:$0xff]
  %v57 = vld [vmem:[%s2 + $0x10] sm:$0xff]
  %v58 = vld [vmem:[%s2 + $0x18] sm:$0xff]
  %v59 = vld [vmem:[%s2 + $0x20] sm:$0xff]
  %v60 = vld [vmem:[%s2 + $0x28] sm:$0xff]
  %v61 = vld [vmem:[%s2 + $0x30] sm:$0xff]
  %v62 = vld [vmem:[%s2 + $0x38] sm:$0xff]
  %v63 = vld [vmem:[%s2 + $0x40] sm:$0xff]
  %v64 = vld [vmem:[%s2 + $0x48] sm:$0xff]
  %v65 = vld [vmem:[%s2 + $0x50] sm:$0xff]
  %v66 = vld [vmem:[%s2 + $0x58] sm:$0xff]
  %v67 = vld [vmem:[%s2 + $0x60] sm:$0xff]
  %v68 = vld [vmem:[%s2 + $0x68] sm:$0xff]
  %v69 = vld [vmem:[%s2 + $0x70] sm:$0xff]
  %v70 = vld [vmem:[%s2 + $0x78] sm:$0xff]
  %72 = vset.pattern.permute.xlu0 0
  %73 = vperm.xlu0 %72, %v55
  %v74 = vpop.permute.xlu0 %73
  %77 = vset.pattern.permute.xlu0 0
  %78 = vperm.xlu0 %77, %v56
  %v79 = vpop.permute.xlu0 %78
  %82 = vset.pattern.permute.xlu0 0
  %83 = vperm.xlu0 %82, %v57
  %v84 = vpop.permute.xlu0 %83
  %87 = vset.pattern.permute.xlu0 0
  %88 = vperm.xlu0 %87, %v58
  %v89 = vpop.permute.xlu0 %88
  %92 = vset.pattern.permute.xlu0 0
  %93 = vperm.xlu0 %92, %v59
  %v94 = vpop.permute.xlu0 %93
  %97 = vset.pattern.permute.xlu0 0
  %98 = vperm.xlu0 %97, %v60
  %v99 = vpop.permute.xlu0 %98
  %102 = vset.pattern.permute.xlu0 0
  %103 = vperm.xlu0 %102, %v61
  %v104 = vpop.permute.xlu0 %103
  %107 = vset.pattern.permute.xlu0 0
  %108 = vperm.xlu0 %107, %v62
  %v109 = vpop.permute.xlu0 %108
  %112 = vset.pattern.permute.xlu0 0
  %113 = vperm.xlu0 %112, %v63
  %v114 = vpop.permute.xlu0 %113
  %117 = vset.pattern.permute.xlu0 0
  %118 = vperm.xlu0 %117, %v64
  %v119 = vpop.permute.xlu0 %118
  %122 = vset.pattern.permute.xlu0 0
  %123 = vperm.xlu0 %122, %v65
  %v124 = vpop.permute.xlu0 %123
  %127 = vset.pattern.permute.xlu0 0
  %128 = vperm.xlu0 %127, %v66
  %v129 = vpop.permute.xlu0 %128
  %132 = vset.pattern.permute.xlu0 0
  %133 = vperm.xlu0 %132, %v67
  %v134 = vpop.permute.xlu0 %133
  %137 = vset.pattern.permute.xlu0 0
  %138 = vperm.xlu0 %137, %v68
  %v139 = vpop.permute.xlu0 %138
  %142 = vset.pattern.permute.xlu0 0
  %143 = vperm.xlu0 %142, %v69
  %v144 = vpop.permute.xlu0 %143
  %147 = vset.pattern.permute.xlu0 0
  %148 = vperm.xlu0 %147, %v70
  %v149 = vpop.permute.xlu0 %148
  %151 = vmatprep.subr.mxu0 0.0
  %152 = vmatpush1.msra.mxu0 %v54
  %153 = vmatprep.subr.mxu0 0.0
  %154 = vmatpush1.msra.mxu0 %v53
  %155 = vmatprep.subr.mxu0 0.0
  %156 = vmatpush1.msra.mxu0 %v52
  %157 = vmatprep.subr.mxu0 0.0
  %158 = vmatpush1.msra.mxu0 %v51
  %159 = vmatprep.subr.mxu0 0.0
  %160 = vmatpush1.msra.mxu0 %v50
  %161 = vmatprep.subr.mxu0 0.0
  %162 = vmatpush1.msra.mxu0 %v49
  %163 = vmatprep.subr.mxu0 0.0
  %164 = vmatpush1.msra.mxu0 %v48
  %165 = vmatprep.subr.mxu0 0.0
  %166 = vmatpush1.msra.mxu0 %v47
  %167 = vmatprep.subr.mxu0 0.0
  %168 = vmatpush1.msra.mxu0 %v46
  %169 = vmatprep.subr.mxu0 0.0
  %170 = vmatpush1.msra.mxu0 %v45
  %171 = vmatprep.subr.mxu0 0.0
  %172 = vmatpush1.msra.mxu0 %v44
  %173 = vmatprep.subr.mxu0 0.0
  %174 = vmatpush1.msra.mxu0 %v43
  %175 = vmatprep.subr.mxu0 0.0
  %176 = vmatpush1.msra.mxu0 %v42
  %177 = vmatprep.subr.mxu0 0.0
  %178 = vmatpush1.msra.mxu0 %v41
  %179 = vmatprep.subr.mxu0 0.0
  %180 = vmatpush1.msra.mxu0 %v40
  %181 = vmatprep.subr.mxu0 0.0
  %182 = vmatpush1.msra.mxu0 %v39
  %183 = vmatprep.subr.mxu0 0.0
  %184 = vmatpush2.msra.mxu0 0.0
  %185 = vmatprep.subr.mxu0 0.0
  %186 = vmatpush2.msra.mxu0 0.0
  %187 = vmatprep.subr.mxu0 0.0
  %188 = vmatpush2.msra.mxu0 0.0
  %189 = vmatprep.subr.mxu0 0.0
  %190 = vmatpush2.msra.mxu0 0.0
  %191 = vmatprep.subr.mxu0 0.0
  %192 = vmatpush2.msra.mxu0 0.0
  %193 = vmatprep.subr.mxu0 0.0
  %194 = vmatpush2.msra.mxu0 0.0
  %195 = vmatprep.subr.mxu0 0.0
  %196 = vmatpush2.msra.mxu0 0.0
  %197 = vmatprep.subr.mxu0 0.0
  %198 = vmatpush2.msra.mxu0 0.0
  %199 = vmatprep.subr.mxu0 0.0
  %200 = vmatpush2.msra.mxu0 0.0
  %201 = vmatprep.subr.mxu0 0.0
  %202 = vmatpush2.msra.mxu0 0.0
  %203 = vmatprep.subr.mxu0 0.0
  %204 = vmatpush2.msra.mxu0 0.0
  %205 = vmatprep.subr.mxu0 0.0
  %206 = vmatpush2.msra.mxu0 0.0
  %207 = vmatprep.subr.mxu0 0.0
  %208 = vmatpush2.msra.mxu0 0.0
  %209 = vmatprep.subr.mxu0 0.0
  %210 = vmatpush2.msra.mxu0 0.0
  %211 = vmatprep.subr.mxu0 0.0
  %212 = vmatpush2.msra.mxu0 0.0
  %213 = vmatprep.subr.mxu0 0.0
  %214 = vmatpush2.msra.mxu0 0.0
  %215 = vmatprep.mubr.f32.mxu0 0.0
  %216 = vmatmul.mubr.f32.gmra.mxu0 %v23
  %v217 = vpop.f32.mrf.mxu0
  %v218 = vadd.f32 %v74, %v217
  %v219 = vpop.f32.mrf.mxu0
  %220 = vmatprep.mubr.f32.mxu0 0.0
  %221 = vmatmul.mubr.f32.gmra.mxu0 %v24
  %v222 = vpop.f32.mrf.mxu0
  %v223 = vadd.f32 %v79, %v222
  %v224 = vpop.f32.mrf.mxu0
  %225 = vmatprep.mubr.f32.mxu0 0.0
  %226 = vmatmul.mubr.f32.gmra.mxu0 %v25
  %v227 = vpop.f32.mrf.mxu0
  %v228 = vadd.f32 %v84, %v227
  %v229 = vpop.f32.mrf.mxu0
  %230 = vmatprep.mubr.f32.mxu0 0.0
  %231 = vmatmul.mubr.f32.gmra.mxu0 %v26
  %v232 = vpop.f32.mrf.mxu0
  %v233 = vadd.f32 %v89, %v232
  %v234 = vpop.f32.mrf.mxu0
  %235 = vmatprep.mubr.f32.mxu0 0.0
  %236 = vmatmul.mubr.f32.gmra.mxu0 %v27
  %v237 = vpop.f32.mrf.mxu0
  %v238 = vadd.f32 %v94, %v237
  %v239 = vpop.f32.mrf.mxu0
  %240 = vmatprep.mubr.f32.mxu0 0.0
  %241 = vmatmul.mubr.f32.gmra.mxu0 %v28
  %v242 = vpop.f32.mrf.mxu0
  %v243 = vadd.f32 %v99, %v242
  %v244 = vpop.f32.mrf.mxu0
  %245 = vmatprep.mubr.f32.mxu0 0.0
  %246 = vmatmul.mubr.f32.gmra.mxu0 %v29
  %v247 = vpop.f32.mrf.mxu0
  %v248 = vadd.f32 %v104, %v247
  %v249 = vpop.f32.mrf.mxu0
  %250 = vmatprep.mubr.f32.mxu0 0.0
  %251 = vmatmul.mubr.f32.gmra.mxu0 %v30
  %v252 = vpop.f32.mrf.mxu0
  %v253 = vadd.f32 %v109, %v252
  %v254 = vpop.f32.mrf.mxu0
  %255 = vmatprep.mubr.f32.mxu0 0.0
  %256 = vmatmul.mubr.f32.gmra.mxu0 %v31
  %v257 = vpop.f32.mrf.mxu0
  %v258 = vadd.f32 %v114, %v257
  %v259 = vpop.f32.mrf.mxu0
  %260 = vmatprep.mubr.f32.mxu0 0.0
  %261 = vmatmul.mubr.f32.gmra.mxu0 %v32
  %v262 = vpop.f32.mrf.mxu0
  %v263 = vadd.f32 %v119, %v262
  %v264 = vpop.f32.mrf.mxu0
  %265 = vmatprep.mubr.f32.mxu0 0.0
  %266 = vmatmul.mubr.f32.gmra.mxu0 %v33
  %v267 = vpop.f32.mrf.mxu0
  %v268 = vadd.f32 %v124, %v267
  %v269 = vpop.f32.mrf.mxu0
  %270 = vmatprep.mubr.f32.mxu0 0.0
  %271 = vmatmul.mubr.f32.gmra.mxu0 %v34
  %v272 = vpop.f32.mrf.mxu0
  %v273 = vadd.f32 %v129, %v272
  %v274 = vpop.f32.mrf.mxu0
  %275 = vmatprep.mubr.f32.mxu0 0.0
  %276 = vmatmul.mubr.f32.gmra.mxu0 %v35
  %v277 = vpop.f32.mrf.mxu0
  %v278 = vadd.f32 %v134, %v277
  %v279 = vpop.f32.mrf.mxu0
  %280 = vmatprep.mubr.f32.mxu0 0.0
  %281 = vmatmul.mubr.f32.gmra.mxu0 %v36
  %v282 = vpop.f32.mrf.mxu0
  %v283 = vadd.f32 %v139, %v282
  %v284 = vpop.f32.mrf.mxu0
  %285 = vmatprep.mubr.f32.mxu0 0.0
  %286 = vmatmul.mubr.f32.gmra.mxu0 %v37
  %v287 = vpop.f32.mrf.mxu0
  %v288 = vadd.f32 %v144, %v287
  %v289 = vpop.f32.mrf.mxu0
  %290 = vmatprep.mubr.f32.mxu0 0.0
  %291 = vmatmul.mubr.f32.gmra.mxu0 %v38
  %v292 = vpop.f32.mrf.mxu0
  %v293 = vadd.f32 %v149, %v292
  %v294 = vpop.f32.mrf.mxu0
  %295 = vdwg.mxu0
  %v296 = vmax.f32 %v218, 0.0
  %v297 = vmax.f32 %v223, 0.0
  %v298 = vmax.f32 %v228, 0.0
  %v299 = vmax.f32 %v233, 0.0
  %v300 = vmax.f32 %v238, 0.0
  %v301 = vmax.f32 %v243, 0.0
  %v302 = vmax.f32 %v248, 0.0
  %v303 = vmax.f32 %v253, 0.0
  %v304 = vmax.f32 %v258, 0.0
  %v305 = vmax.f32 %v263, 0.0
  %v306 = vmax.f32 %v268, 0.0
  %v307 = vmax.f32 %v273, 0.0
  %v308 = vmax.f32 %v278, 0.0
  %v309 = vmax.f32 %v283, 0.0
  %v310 = vmax.f32 %v288, 0.0
  %v311 = vmax.f32 %v293, 0.0
  %v312 = vld [vmem:[%s3] sm:$0xff]
  %v313 = vld [vmem:[%s3 + $0x8] sm:$0xff]
  %v314 = vld [vmem:[%s3 + $0x10] sm:$0xff]
  %v315 = vld [vmem:[%s3 + $0x18] sm:$0xff]
  %v316 = vld [vmem:[%s3 + $0x20] sm:$0xff]
  %v317 = vld [vmem:[%s3 + $0x28] sm:$0xff]
  %v318 = vld [vmem:[%s3 + $0x30] sm:$0xff]
  %v319 = vld [vmem:[%s3 + $0x38] sm:$0xff]
  %v320 = vld [vmem:[%s3 + $0x40] sm:$0xff]
  %v321 = vld [vmem:[%s3 + $0x48] sm:$0xff]
  %v322 = vld [vmem:[%s3 + $0x50] sm:$0xff]
  %v323 = vld [vmem:[%s3 + $0x58] sm:$0xff]
  %v324 = vld [vmem:[%s3 + $0x60] sm:$0xff]
  %v325 = vld [vmem:[%s3 + $0x68] sm:$0xff]
  %v326 = vld [vmem:[%s3 + $0x70] sm:$0xff]
  %v327 = vld [vmem:[%s3 + $0x78] sm:$0xff]
  %329 = vset.pattern.permute.xlu0 0
  %330 = vperm.xlu0 %329, %v312
  %v331 = vpop.permute.xlu0 %330
  %334 = vset.pattern.permute.xlu0 0
  %335 = vperm.xlu0 %334, %v313
  %v336 = vpop.permute.xlu0 %335
  %339 = vset.pattern.permute.xlu0 0
  %340 = vperm.xlu0 %339, %v314
  %v341 = vpop.permute.xlu0 %340
  %344 = vset.pattern.permute.xlu0 0
  %345 = vperm.xlu0 %344, %v315
  %v346 = vpop.permute.xlu0 %345
  %349 = vset.pattern.permute.xlu0 0
  %350 = vperm.xlu0 %349, %v316
  %v351 = vpop.permute.xlu0 %350
  %354 = vset.pattern.permute.xlu0 0
  %355 = vperm.xlu0 %354, %v317
  %v356 = vpop.permute.xlu0 %355
  %359 = vset.pattern.permute.xlu0 0
  %360 = vperm.xlu0 %359, %v318
  %v361 = vpop.permute.xlu0 %360
  %364 = vset.pattern.permute.xlu0 0
  %365 = vperm.xlu0 %364, %v319
  %v366 = vpop.permute.xlu0 %365
  %369 = vset.pattern.permute.xlu0 0
  %370 = vperm.xlu0 %369, %v320
  %v371 = vpop.permute.xlu0 %370
  %374 = vset.pattern.permute.xlu0 0
  %375 = vperm.xlu0 %374, %v321
  %v376 = vpop.permute.xlu0 %375
  %379 = vset.pattern.permute.xlu0 0
  %380 = vperm.xlu0 %379, %v322
  %v381 = vpop.permute.xlu0 %380
  %384 = vset.pattern.permute.xlu0 0
  %385 = vperm.xlu0 %384, %v323
  %v386 = vpop.permute.xlu0 %385
  %389 = vset.pattern.permute.xlu0 0
  %390 = vperm.xlu0 %389, %v324
  %v391 = vpop.permute.xlu0 %390
  %394 = vset.pattern.permute.xlu0 0
  %395 = vperm.xlu0 %394, %v325
  %v396 = vpop.permute.xlu0 %395
  %399 = vset.pattern.permute.xlu0 0
  %400 = vperm.xlu0 %399, %v326
  %v401 = vpop.permute.xlu0 %400
  %404 = vset.pattern.permute.xlu0 0
  %405 = vperm.xlu0 %404, %v327
  %v406 = vpop.permute.xlu0 %405
  %v408 = vmul.f32 %v296, %v331
  %v409 = vmul.f32 %v297, %v336
  %v410 = vmul.f32 %v298, %v341
  %v411 = vmul.f32 %v299, %v346
  %v412 = vmul.f32 %v300, %v351
  %v413 = vmul.f32 %v301, %v356
  %v414 = vmul.f32 %v302, %v361
  %v415 = vmul.f32 %v303, %v366
  %v416 = vmul.f32 %v304, %v371
  %v417 = vmul.f32 %v305, %v376
  %v418 = vmul.f32 %v306, %v381
  %v419 = vmul.f32 %v307, %v386
  %v420 = vmul.f32 %v308, %v391
  %v421 = vmul.f32 %v309, %v396
  %v422 = vmul.f32 %v310, %v401
  %v423 = vmul.f32 %v311, %v406
  %vm424 = vcmask 130048
  %v425 = vsel %vm424, %v408, 0.0
  %v426 = vsel %vm424, %v409, 0.0
  %v427 = vadd.f32 %v425, %v426
  %v428 = vsel %vm424, %v410, 0.0
  %v429 = vadd.f32 %v427, %v428
  %v430 = vsel %vm424, %v411, 0.0
  %v431 = vadd.f32 %v429, %v430
  %v432 = vsel %vm424, %v412, 0.0
  %v433 = vadd.f32 %v431, %v432
  %v434 = vsel %vm424, %v413, 0.0
  %v435 = vadd.f32 %v433, %v434
  %v436 = vsel %vm424, %v414, 0.0
  %v437 = vadd.f32 %v435, %v436
  %v438 = vsel %vm424, %v415, 0.0
  %v439 = vadd.f32 %v437, %v438
  %v440 = vsel %vm424, %v416, 0.0
  %v441 = vadd.f32 %v439, %v440
  %v442 = vsel %vm424, %v417, 0.0
  %v443 = vadd.f32 %v441, %v442
  %v444 = vsel %vm424, %v418, 0.0
  %v445 = vadd.f32 %v443, %v444
  %v446 = vsel %vm424, %v419, 0.0
  %v447 = vadd.f32 %v445, %v446
  %v448 = vsel %vm424, %v420, 0.0
  %v449 = vadd.f32 %v447, %v448
  %v450 = vsel %vm424, %v421, 0.0
  %v451 = vadd.f32 %v449, %v450
  %v452 = vsel %vm424, %v422, 0.0
  %v453 = vadd.f32 %v451, %v452
  %v454 = vsel %vm424, %v423, 0.0
  %v455 = vadd.f32 %v453, %v454
  %v456 = vrot.slane %v455, 4
  %v457 = vadd.f32 %v455, %v456
  %v458 = vrot.slane %v457, 2
  %v459 = vadd.f32 %v457, %v458
  %v460 = vrot.slane %v459, 1
  %v461 = vadd.f32 %v459, %v460
  %s462 = sld [smem:[#allocation2]]
  %v463 = vstv %s462
  %v464 = vadd.f32 %v461, %v463
  %vm465 = vcmp.gt.f32.partialorder %v464, 0.0
  %v466 = vsel %vm465, 1, 0
  %v467 = vcvt.s32.f32 %v466
  %vm468 = vcmask 122880
  %469 = vst.msk [vmem:[%s5] sm:$0x1] %vm468, %v467
  %v470 = vmul.f32 %v464, 0.5
  %v471 = vtanh.pop %v470
  %v472 = vadd.f32 %v471, 1.0
  %v473 = vmul.f32 %v472, 0.5
  %474 = vst.msk [vmem:[%s6] sm:$0x1] %vm468, %v473
  // Predicated region
  $region22: #{binary_patching_forward.1} parent=0 // pred_check
    _
  $region23: #{binary_patching_forward.1} parent=0 // pred_check_branch
    %476 = sbr.rel (0) target = $region25
  $region24: #{binary_patching_forward.1} parent=0 // pred_region
    _
  $region25: #{binary_patching_forward.1} parent=0 // pred_fallthru
    _
  // Predicated region
  $region26: #{binary_patching_forward.1} parent=0 // pred_check
    _
  $region27: #{binary_patching_forward.1} parent=0 // pred_check_branch
    %478 = sbr.rel (0) target = $region29
  $region28: #{binary_patching_forward.1} parent=0 // pred_region
    _
  $region29: #{binary_patching_forward.1} parent=0 // pred_fallthru
    _
  // Predicated region
  $region30: #{binary_patching_forward.1} parent=0 // pred_check
    _
  $region31: #{binary_patching_forward.1} parent=0 // pred_check_branch
    %480 = sbr.rel (0) target = $region33
  $region32: #{binary_patching_forward.1} parent=0 // pred_region
    _
  $region33: #{binary_patching_forward.1} parent=0 // pred_fallthru
    _
  // Predicated region
  $region34: #{binary_patching_forward.1} parent=0 // pred_check
    _
  $region35: #{binary_patching_forward.1} parent=0 // pred_check_branch
    %482 = sbr.rel (0) target = $region37
  $region36: #{binary_patching_forward.1} parent=0 // pred_region
    _
  $region37: #{binary_patching_forward.1} parent=0 // pred_fallthru
    _

</llo_original>
